<compile_context>
chip_gen: v6e
topology: v6e:2x2x1
jax: 0.10.0
libtpu: 0.0.40
codegen_flags: <defaults>
</compile_context>

<pallas_src>
import functools

import jax
import jax.numpy as jnp
from jax import lax
from jax.experimental import pallas as pl
from jax.experimental.pallas import tpu as pltpu


def _intp_kernel(xf_ref, cf_ref,
                 w1_ref, b1_ref, w2_ref, b2_ref,
                 w3_ref, b3_ref, w4_ref, b4_ref,
                 out_ref):
    M, E = xf_ref.shape            # M = tB * N flattened (batch, concept) rows
    tB, C = out_ref.shape
    N = M // tB                    # concepts per batch element (static)

    xf = xf_ref[...]               # (M, E)

    # ---- coeff_nn: Linear(E,E) -> LeakyReLU(0.01) -> Linear(E,C) -> Sigmoid ----
    h1 = jnp.dot(xf, w1_ref[...], preferred_element_type=jnp.float32) + b1_ref[...]
    h1 = jnp.where(h1 > 0, h1, 0.01 * h1)
    coeff = jax.nn.sigmoid(
        jnp.dot(h1, w2_ref[...], preferred_element_type=jnp.float32) + b2_ref[...])

    # ---- bias_nn: Linear(E,E) -> LeakyReLU(0.01) -> Linear(E,C) (post-mean) ----
    h2 = jnp.dot(xf, w3_ref[...], preferred_element_type=jnp.float32) + b3_ref[...]
    h2 = jnp.where(h2 > 0, h2, 0.01 * h2)
    bias = jnp.dot(h2, w4_ref[...], preferred_element_type=jnp.float32) + b4_ref[...]

    # Per-row combination: c-weighted coeff + (1/N)-weighted bias.  (M, C)
    combined = cf_ref[...] * coeff + bias * (1.0 / N)

    # Segment-sum the N concept rows of each batch element with one tiny selection
    # matmul (no in-kernel reshape / gather): sel[b, m] = 1 iff m in [b*N, (b+1)*N).
    row = lax.broadcasted_iota(jnp.int32, (tB, M), 0)
    col = lax.broadcasted_iota(jnp.int32, (tB, M), 1)
    sel = jnp.logical_and(col >= row * N, col < (row + 1) * N).astype(jnp.float32)
    out_ref[...] = jnp.dot(sel, combined,
                           preferred_element_type=jnp.float32).astype(out_ref.dtype)


def intp_linear_layer1_forward(x, c, w1, b1, w2, b2, w3, b3, w4, b4, *, block_batch=None):
    """Pallas forward. x: (B, N, E), c: (B, N). Returns preds: (B, n_classes).

    Weights are pre-transposed to (in_features, out_features).
    """
    B, N, E = x.shape
    C = w2.shape[1]

    # Batch tile: whole batch if small (single grid step), otherwise the largest
    # multiple-of-8 divisor of B that is <= 1024.
    if block_batch is None:
        if B <= 1024:
            block_batch = B
        else:
            block_batch = B
            for cand in range(1024, 7, -8):
                if B % cand == 0:
                    block_batch = cand
                    break
    tB = block_batch
    assert B % tB == 0, "batch must be divisible by block_batch"
    assert tB == B or tB % 8 == 0, "batch tile must be the full batch or a multiple of 8"

    # Flatten (batch, concept) rows in the wrapper (free HBM-level reshape) so the
    # kernel works on lane-dense 2-D tiles with no in-kernel relayout.
    x_flat = x.reshape(B * N, E)
    c_flat = c.reshape(B * N, 1).astype(x.dtype)

    b1r = b1.reshape(1, E)
    b2r = b2.reshape(1, C)
    b3r = b3.reshape(1, E)
    b4r = b4.reshape(1, C)

    preds = pl.pallas_call(
        _intp_kernel,
        out_shape=jax.ShapeDtypeStruct((B, C), x.dtype),
        grid_spec=pltpu.PrefetchScalarGridSpec(
            num_scalar_prefetch=0,
            grid=(B // tB,),
            in_specs=[
                pl.BlockSpec((tB * N, E), lambda i: (i, 0)),   # flattened x rows
                pl.BlockSpec((tB * N, 1), lambda i: (i, 0)),   # flattened concept scores
                pl.BlockSpec((E, E), lambda i: (0, 0)),        # coeff_nn W1
                pl.BlockSpec((1, E), lambda i: (0, 0)),        # coeff_nn b1
                pl.BlockSpec((E, C), lambda i: (0, 0)),        # coeff_nn W2
                pl.BlockSpec((1, C), lambda i: (0, 0)),        # coeff_nn b2
                pl.BlockSpec((E, E), lambda i: (0, 0)),        # bias_nn W3
                pl.BlockSpec((1, E), lambda i: (0, 0)),        # bias_nn b3
                pl.BlockSpec((E, C), lambda i: (0, 0)),        # bias_nn W4
                pl.BlockSpec((1, C), lambda i: (0, 0)),        # bias_nn b4
            ],
            out_specs=pl.BlockSpec((tB, C), lambda i: (i, 0)),
        ),
        compiler_params=pltpu.CompilerParams(dimension_semantics=("parallel",)),
    )(x_flat, c_flat, w1, b1r, w2, b2r, w3, b3r, w4, b4r)

    return preds


def _reference_forward(x, c, w1, b1, w2, b2, w3, b3, w4, b4):
    """Pure-JAX reference mirroring the PyTorch module (bias_computation='post')."""
    def leaky(v):
        return jnp.where(v > 0, v, 0.01 * v)

    h1 = leaky(x @ w1 + b1)
    coeff = jax.nn.sigmoid(h1 @ w2 + b2)                 # (B, N, C)
    logits = jnp.sum(c[:, :, None] * coeff, axis=1)      # (B, C)
    h2 = leaky(x @ w3 + b3)
    bias_vals = jnp.mean(h2 @ w4 + b4, axis=1)           # (B, C)
    return logits + bias_vals


if __name__ == "__main__":
    B, n_concepts, emb_size, n_classes = 16, 6, 32, 5

    key = jax.random.PRNGKey(0)
    kx, kc, k1, k2, k3, k4, k5, k6, k7, k8 = jax.random.split(key, 10)

    x = jax.random.normal(kx, (B, n_concepts, emb_size), dtype=jnp.float32)
    c = jax.random.uniform(kc, (B, n_concepts), dtype=jnp.float32)

    # Linear weights stored pre-transposed: (in_features, out_features).
    w1 = 0.1 * jax.random.normal(k1, (emb_size, emb_size), dtype=jnp.float32)
    b1 = 0.1 * jax.random.normal(k2, (emb_size,), dtype=jnp.float32)
    w2 = 0.1 * jax.random.normal(k3, (emb_size, n_classes), dtype=jnp.float32)
    b2 = 0.1 * jax.random.normal(k4, (n_classes,), dtype=jnp.float32)
    w3 = 0.1 * jax.random.normal(k5, (emb_size, emb_size), dtype=jnp.float32)
    b3 = 0.1 * jax.random.normal(k6, (emb_size,), dtype=jnp.float32)
    w4 = 0.1 * jax.random.normal(k7, (emb_size, n_classes), dtype=jnp.float32)
    b4 = 0.1 * jax.random.normal(k8, (n_classes,), dtype=jnp.float32)

    fwd = jax.jit(functools.partial(intp_linear_layer1_forward, block_batch=8))
    preds = fwd(x, c, w1, b1, w2, b2, w3, b3, w4, b4)
    jax.block_until_ready(preds)

    ref = _reference_forward(x, c, w1, b1, w2, b2, w3, b3, w4, b4)
    assert preds.shape == (B, n_classes)
    assert jnp.allclose(preds, ref, atol=1e-5, rtol=1e-4), (
        float(jnp.max(jnp.abs(preds - ref))))

    print("KERNEL_OK")
</pallas_src>

<mosaic_0001>
module attributes {stable_mosaic.version = 11 : i64} {
  func.func @_intp_kernel(%arg0: i32, %arg1: memref<48x32xf32, #tpu.memory_space<vmem>>, %arg2: memref<48x1xf32, #tpu.memory_space<vmem>>, %arg3: memref<32x32xf32, #tpu.memory_space<vmem>>, %arg4: memref<1x32xf32, #tpu.memory_space<vmem>>, %arg5: memref<32x5xf32, #tpu.memory_space<vmem>>, %arg6: memref<1x5xf32, #tpu.memory_space<vmem>>, %arg7: memref<32x32xf32, #tpu.memory_space<vmem>>, %arg8: memref<1x32xf32, #tpu.memory_space<vmem>>, %arg9: memref<32x5xf32, #tpu.memory_space<vmem>>, %arg10: memref<1x5xf32, #tpu.memory_space<vmem>>, %arg11: memref<8x5xf32, #tpu.memory_space<vmem>>) attributes {dimension_semantics = [#tpu.dimension_semantics<parallel>], iteration_bounds = array<i64: 2>, scalar_prefetch = 0 : i64, scratch_operands = 0 : i64, tpu.core_type = #tpu.core_type<tc>, window_params = [{transform_indices = @transform_0, window_bounds = array<i64: 48, 32>}, {transform_indices = @transform_1, window_bounds = array<i64: 48, 1>}, {pipeline_mode = #tpu.pipeline_mode<synchronous>, transform_indices = @transform_2, window_bounds = array<i64: 32, 32>}, {pipeline_mode = #tpu.pipeline_mode<synchronous>, transform_indices = @transform_3, window_bounds = array<i64: 1, 32>}, {pipeline_mode = #tpu.pipeline_mode<synchronous>, transform_indices = @transform_4, window_bounds = array<i64: 32, 5>}, {pipeline_mode = #tpu.pipeline_mode<synchronous>, transform_indices = @transform_5, window_bounds = array<i64: 1, 5>}, {pipeline_mode = #tpu.pipeline_mode<synchronous>, transform_indices = @transform_6, window_bounds = array<i64: 32, 32>}, {pipeline_mode = #tpu.pipeline_mode<synchronous>, transform_indices = @transform_7, window_bounds = array<i64: 1, 32>}, {pipeline_mode = #tpu.pipeline_mode<synchronous>, transform_indices = @transform_8, window_bounds = array<i64: 32, 5>}, {pipeline_mode = #tpu.pipeline_mode<synchronous>, transform_indices = @transform_9, window_bounds = array<i64: 1, 5>}, {transform_indices = @transform_10, window_bounds = array<i64: 8, 5>}]} {
    %c0 = arith.constant 0 : index
    %c0_0 = arith.constant 0 : index
    %0 = vector.load %arg1[%c0, %c0_0] : memref<48x32xf32, #tpu.memory_space<vmem>>, vector<48x32xf32>
    %c0_1 = arith.constant 0 : index
    %c0_2 = arith.constant 0 : index
    %1 = vector.load %arg3[%c0_1, %c0_2] : memref<32x32xf32, #tpu.memory_space<vmem>>, vector<32x32xf32>
    %cst = arith.constant dense<0.000000e+00> : vector<48x32xf32>
    %2 = tpu.matmul %0, %1, %cst {dimension_numbers = #tpu.dot_dimension_numbers<[1], [0], [0], [1], [0, 0, 1, 1], [], []>} : vector<48x32xf32>, vector<32x32xf32>, vector<48x32xf32> -> vector<48x32xf32>
    %c0_3 = arith.constant 0 : index
    %c0_4 = arith.constant 0 : index
    %3 = vector.load %arg4[%c0_3, %c0_4] : memref<1x32xf32, #tpu.memory_space<vmem>>, vector<1x32xf32>
    %4 = vector.broadcast %3 : vector<1x32xf32> to vector<48x32xf32>
    %5 = arith.addf %2, %4 : vector<48x32xf32>
    %cst_5 = arith.constant 0.000000e+00 : f32
    %6 = vector.broadcast %cst_5 : f32 to vector<48x32xf32>
    %7 = arith.cmpf ogt, %5, %6 : vector<48x32xf32>
    %cst_6 = arith.constant 0.00999999977 : f32
    %8 = vector.broadcast %cst_6 : f32 to vector<48x32xf32>
    %9 = arith.mulf %8, %5 : vector<48x32xf32>
    %10 = arith.select %7, %5, %9 : vector<48x32xi1>, vector<48x32xf32>
    %c0_7 = arith.constant 0 : index
    %c0_8 = arith.constant 0 : index
    %11 = vector.load %arg5[%c0_7, %c0_8] : memref<32x5xf32, #tpu.memory_space<vmem>>, vector<32x5xf32>
    %cst_9 = arith.constant dense<0.000000e+00> : vector<48x5xf32>
    %12 = tpu.matmul %10, %11, %cst_9 {dimension_numbers = #tpu.dot_dimension_numbers<[1], [0], [0], [1], [0, 0, 1, 1], [], []>} : vector<48x32xf32>, vector<32x5xf32>, vector<48x5xf32> -> vector<48x5xf32>
    %c0_10 = arith.constant 0 : index
    %c0_11 = arith.constant 0 : index
    %13 = vector.load %arg6[%c0_10, %c0_11] : memref<1x5xf32, #tpu.memory_space<vmem>>, vector<1x5xf32>
    %14 = vector.broadcast %13 : vector<1x5xf32> to vector<48x5xf32>
    %15 = arith.addf %12, %14 : vector<48x5xf32>
    %16 = arith.negf %15 : vector<48x5xf32>
    %17 = math.exp %16 : vector<48x5xf32>
    %cst_12 = arith.constant 1.000000e+00 : f32
    %18 = vector.broadcast %cst_12 : f32 to vector<48x5xf32>
    %19 = arith.addf %18, %17 : vector<48x5xf32>
    %20 = arith.divf %18, %19 : vector<48x5xf32>
    %c0_13 = arith.constant 0 : index
    %c0_14 = arith.constant 0 : index
    %21 = vector.load %arg7[%c0_13, %c0_14] : memref<32x32xf32, #tpu.memory_space<vmem>>, vector<32x32xf32>
    %cst_15 = arith.constant dense<0.000000e+00> : vector<48x32xf32>
    %22 = tpu.matmul %0, %21, %cst_15 {dimension_numbers = #tpu.dot_dimension_numbers<[1], [0], [0], [1], [0, 0, 1, 1], [], []>} : vector<48x32xf32>, vector<32x32xf32>, vector<48x32xf32> -> vector<48x32xf32>
    %c0_16 = arith.constant 0 : index
    %c0_17 = arith.constant 0 : index
    %23 = vector.load %arg8[%c0_16, %c0_17] : memref<1x32xf32, #tpu.memory_space<vmem>>, vector<1x32xf32>
    %24 = vector.broadcast %23 : vector<1x32xf32> to vector<48x32xf32>
    %25 = arith.addf %22, %24 : vector<48x32xf32>
    %cst_18 = arith.constant 0.000000e+00 : f32
    %26 = vector.broadcast %cst_18 : f32 to vector<48x32xf32>
    %27 = arith.cmpf ogt, %25, %26 : vector<48x32xf32>
    %cst_19 = arith.constant 0.00999999977 : f32
    %28 = vector.broadcast %cst_19 : f32 to vector<48x32xf32>
    %29 = arith.mulf %28, %25 : vector<48x32xf32>
    %30 = arith.select %27, %25, %29 : vector<48x32xi1>, vector<48x32xf32>
    %c0_20 = arith.constant 0 : index
    %c0_21 = arith.constant 0 : index
    %31 = vector.load %arg9[%c0_20, %c0_21] : memref<32x5xf32, #tpu.memory_space<vmem>>, vector<32x5xf32>
    %cst_22 = arith.constant dense<0.000000e+00> : vector<48x5xf32>
    %32 = tpu.matmul %30, %31, %cst_22 {dimension_numbers = #tpu.dot_dimension_numbers<[1], [0], [0], [1], [0, 0, 1, 1], [], []>} : vector<48x32xf32>, vector<32x5xf32>, vector<48x5xf32> -> vector<48x5xf32>
    %c0_23 = arith.constant 0 : index
    %c0_24 = arith.constant 0 : index
    %33 = vector.load %arg10[%c0_23, %c0_24] : memref<1x5xf32, #tpu.memory_space<vmem>>, vector<1x5xf32>
    %34 = vector.broadcast %33 : vector<1x5xf32> to vector<48x5xf32>
    %35 = arith.addf %32, %34 : vector<48x5xf32>
    %c0_25 = arith.constant 0 : index
    %c0_26 = arith.constant 0 : index
    %36 = vector.load %arg2[%c0_25, %c0_26] : memref<48x1xf32, #tpu.memory_space<vmem>>, vector<48x1xf32>
    %37 = vector.broadcast %36 : vector<48x1xf32> to vector<48x5xf32>
    %38 = arith.mulf %37, %20 : vector<48x5xf32>
    %cst_27 = arith.constant 0.166666672 : f32
    %39 = vector.broadcast %cst_27 : f32 to vector<48x5xf32>
    %40 = arith.mulf %35, %39 : vector<48x5xf32>
    %41 = arith.addf %38, %40 : vector<48x5xf32>
    %42 = tpu.iota {dimensions = array<i32: 0>} : vector<8x48xi32>
    %43 = tpu.iota {dimensions = array<i32: 1>} : vector<8x48xi32>
    %c6_i32 = arith.constant 6 : i32
    %44 = vector.broadcast %c6_i32 : i32 to vector<8x48xi32>
    %45 = arith.muli %42, %44 : vector<8x48xi32>
    %46 = arith.cmpi sge, %43, %45 : vector<8x48xi32>
    %c1_i32 = arith.constant 1 : i32
    %47 = vector.broadcast %c1_i32 : i32 to vector<8x48xi32>
    %48 = arith.addi %42, %47 : vector<8x48xi32>
    %c6_i32_28 = arith.constant 6 : i32
    %49 = vector.broadcast %c6_i32_28 : i32 to vector<8x48xi32>
    %50 = arith.muli %48, %49 : vector<8x48xi32>
    %51 = arith.cmpi slt, %43, %50 : vector<8x48xi32>
    %52 = arith.andi %46, %51 : vector<8x48xi1>
    %53 = arith.extui %52 : vector<8x48xi1> to vector<8x48xi32>
    %54 = arith.sitofp %53 : vector<8x48xi32> to vector<8x48xf32>
    %cst_29 = arith.constant dense<0.000000e+00> : vector<8x5xf32>
    %55 = tpu.matmul %54, %41, %cst_29 {dimension_numbers = #tpu.dot_dimension_numbers<[1], [0], [0], [1], [0, 0, 1, 1], [], []>} : vector<8x48xf32>, vector<48x5xf32>, vector<8x5xf32> -> vector<8x5xf32>
    %c0_30 = arith.constant 0 : index
    %c0_31 = arith.constant 0 : index
    %56 = vector.load %arg11[%c0_30, %c0_31] : memref<8x5xf32, #tpu.memory_space<vmem>>, vector<8x5xf32>
    tpu.vector_store %arg11[%c0_30, %c0_31], %55 {strides = array<i32>} : memref<8x5xf32, #tpu.memory_space<vmem>>, vector<8x5xf32>,
    return
  }
  func.func @transform_0(%arg0: i32) -> (i32, i32) {
    %c0_i32 = arith.constant 0 : i32
    %c0_i32_0 = arith.constant 0 : i32
    return %arg0, %c0_i32 : i32, i32
  }
  func.func @transform_1(%arg0: i32) -> (i32, i32) {
    %c0_i32 = arith.constant 0 : i32
    %c0_i32_0 = arith.constant 0 : i32
    return %arg0, %c0_i32 : i32, i32
  }
  func.func @transform_2(%arg0: i32) -> (i32, i32) {
    %c0_i32 = arith.constant 0 : i32
    %c0_i32_0 = arith.constant 0 : i32
    %c0_i32_1 = arith.constant 0 : i32
    return %c0_i32, %c0_i32_0 : i32, i32
  }
  func.func @transform_3(%arg0: i32) -> (i32, i32) {
    %c0_i32 = arith.constant 0 : i32
    %c0_i32_0 = arith.constant 0 : i32
    %c0_i32_1 = arith.constant 0 : i32
    return %c0_i32, %c0_i32_0 : i32, i32
  }
  func.func @transform_4(%arg0: i32) -> (i32, i32) {
    %c0_i32 = arith.constant 0 : i32
    %c0_i32_0 = arith.constant 0 : i32
    %c0_i32_1 = arith.constant 0 : i32
    return %c0_i32, %c0_i32_0 : i32, i32
  }
  func.func @transform_5(%arg0: i32) -> (i32, i32) {
    %c0_i32 = arith.constant 0 : i32
    %c0_i32_0 = arith.constant 0 : i32
    %c0_i32_1 = arith.constant 0 : i32
    return %c0_i32, %c0_i32_0 : i32, i32
  }
  func.func @transform_6(%arg0: i32) -> (i32, i32) {
    %c0_i32 = arith.constant 0 : i32
    %c0_i32_0 = arith.constant 0 : i32
    %c0_i32_1 = arith.constant 0 : i32
    return %c0_i32, %c0_i32_0 : i32, i32
  }
  func.func @transform_7(%arg0: i32) -> (i32, i32) {
    %c0_i32 = arith.constant 0 : i32
    %c0_i32_0 = arith.constant 0 : i32
    %c0_i32_1 = arith.constant 0 : i32
    return %c0_i32, %c0_i32_0 : i32, i32
  }
  func.func @transform_8(%arg0: i32) -> (i32, i32) {
    %c0_i32 = arith.constant 0 : i32
    %c0_i32_0 = arith.constant 0 : i32
    %c0_i32_1 = arith.constant 0 : i32
    return %c0_i32, %c0_i32_0 : i32, i32
  }
  func.func @transform_9(%arg0: i32) -> (i32, i32) {
    %c0_i32 = arith.constant 0 : i32
    %c0_i32_0 = arith.constant 0 : i32
    %c0_i32_1 = arith.constant 0 : i32
    return %c0_i32, %c0_i32_0 : i32, i32
  }
  func.func @transform_10(%arg0: i32) -> (i32, i32) {
    %c0_i32 = arith.constant 0 : i32
    %c0_i32_0 = arith.constant 0 : i32
    return %arg0, %c0_i32 : i32, i32
  }
}

</mosaic_0001>

<llo_original>
// kernel: intp_linear_layer1_forward.1
$region0: #{intp_linear_layer1_forward.1}
  #allocation0 [shape = 'u32[]', space=smem, size = 0x4, offset = 0x4, fixed_abs, tag = 'smem constant byte address 0x4 - core index']
  #allocation1 [shape = 'u32[144,128]{1,0:T(1,128)}', space=vmem, size = 0x12000, scoped, tag = 'internal scratch']
  %s0 = inlined_call_operand.vmem [shape: f32[96,32], index: 0, kind: input, shape index: {}]
  %s1 = inlined_call_operand.vmem [shape: f32[96,1], index: 1, kind: input, shape index: {}]
  %s2 = inlined_call_operand.vmem [shape: f32[32,32], index: 2, kind: input, shape index: {}]
  %s3 = inlined_call_operand.vmem [shape: f32[1,32], index: 3, kind: input, shape index: {}]
  %s4 = inlined_call_operand.vmem [shape: f32[32,5], index: 4, kind: input, shape index: {}]
  %s5 = inlined_call_operand.vmem [shape: f32[1,5], index: 5, kind: input, shape index: {}]
  %s6 = inlined_call_operand.vmem [shape: f32[32,32], index: 6, kind: input, shape index: {}]
  %s7 = inlined_call_operand.vmem [shape: f32[1,32], index: 7, kind: input, shape index: {}]
  %s8 = inlined_call_operand.vmem [shape: f32[32,5], index: 8, kind: input, shape index: {}]
  %s9 = inlined_call_operand.vmem [shape: f32[1,5], index: 9, kind: input, shape index: {}]
  %s10 = inlined_call_operand.vmem [shape: f32[16,5], index: 10, kind: output, shape index: {}]
  %s11 = sld [smem:[#allocation0]]
  $region73: #{intp_linear_layer1_forward.1} parent=0
    _
  %s13 = ssub.s32 1, %s11
  %s14 = scalar_select 0, %s13, %s11
  loop: start=0, step=1, limit=4
  $region2: #{intp_linear_layer1_forward.1} parent=0 // loop_pre_header
    _
  $region3: #{intp_linear_layer1_forward.1} parent=0 // loop_header
    %s16 = sphi 0, %s20
    %p17 = scmp.ge.s32.totalorder %s16, 4
    %s26 = sphi 0, %s28
    %s29 = sphi 0, %s26
    %s30 = sphi 0, %s29
    %s46 = sphi 0, %s30
    %s52 = sphi 0, %s54
    %s55 = sphi 0, %s52
    %s56 = sphi 0, %s55
    %s72 = sphi 0, %s56
    %s76 = sphi 0, %s76
    %s78 = sphi 0, %s76
    %s79 = sphi 0, %s78
    %s93 = sphi 0, %s79
    %s97 = sphi 0, %s97
    %s99 = sphi 0, %s97
    %s100 = sphi 0, %s99
    %s114 = sphi 0, %s100
    %s118 = sphi 0, %s118
    %s120 = sphi 0, %s118
    %s121 = sphi 0, %s120
    %s135 = sphi 0, %s121
    %s139 = sphi 0, %s139
    %s141 = sphi 0, %s139
    %s142 = sphi 0, %s141
    %s156 = sphi 0, %s142
    %s160 = sphi 0, %s160
    %s162 = sphi 0, %s160
    %s163 = sphi 0, %s162
    %s177 = sphi 0, %s163
    %s181 = sphi 0, %s181
    %s183 = sphi 0, %s181
    %s184 = sphi 0, %s183
    %s198 = sphi 0, %s184
    %s202 = sphi 0, %s202
    %s204 = sphi 0, %s202
    %s205 = sphi 0, %s204
    %s219 = sphi 0, %s205
    %s223 = sphi 0, %s223
    %s225 = sphi 0, %s223
    %s226 = sphi 0, %s225
    %s240 = sphi 0, %s226
    %s246 = sphi 0, %s248
    %s249 = sphi 0, %s246
    %s250 = sphi 0, %s249
    %s266 = sphi 0, %s250
  $region4: #{intp_linear_layer1_forward.1} parent=0 // loop_header_branch
    %19 = sbr.rel (%p17) target = $region8
  $region5: #{intp_linear_layer1_forward.1} parent=0 // loop_body
    %s21 = ssub.s32 %s16, 1
    %s22 = ssub.s32 %s16, 2
    %s23 = sadd.s32 %s16, 1
    %s24 = ssub.s32 %s16, %s23
    %p25 = scmp.eq.s32.totalorder %s24, 0
    %s27 = sadd.s32 %s26, 1
    %s28 = scalar_select %p25, %s26, %s27
    %p31 = pneg %p25
    %p32 = scmp.eq.s32.totalorder %s16, 1
    %p33 = por %p31, %p32
    %p34 = scmp.ne.s32.totalorder %s26, %s29
    %p35 = scmp.eq.s32.totalorder %s16, 0
    %p36 = por %p34, %p35
    %p37 = scmp.ne.s32.totalorder %s26, %s29
    %p38 = scmp.eq.s32.totalorder %s21, 1
    %p39 = por %p37, %p38
    %p40 = scmp.ne.s32.totalorder %s29, %s30
    %p41 = scmp.eq.s32.totalorder %s21, 0
    %p42 = por %p40, %p41
    %p43 = scmp.ne.s32.totalorder %s29, %s30
    %p44 = scmp.eq.s32.totalorder %s22, 1
    %p45 = por %p43, %p44
    %p47 = scmp.ne.s32.totalorder %s30, %s46
    %p48 = scmp.eq.s32.totalorder %s22, 0
    %p49 = por %p47, %p48
    %s50 = ssub.s32 %s16, %s23
    %p51 = scmp.eq.s32.totalorder %s50, 0
    %s53 = sadd.s32 %s52, 1
    %s54 = scalar_select %p51, %s52, %s53
    %p57 = pneg %p51
    %p58 = scmp.eq.s32.totalorder %s16, 1
    %p59 = por %p57, %p58
    %p60 = scmp.ne.s32.totalorder %s52, %s55
    %p61 = scmp.eq.s32.totalorder %s16, 0
    %p62 = por %p60, %p61
    %p63 = scmp.ne.s32.totalorder %s52, %s55
    %p64 = scmp.eq.s32.totalorder %s21, 1
    %p65 = por %p63, %p64
    %p66 = scmp.ne.s32.totalorder %s55, %s56
    %p67 = scmp.eq.s32.totalorder %s21, 0
    %p68 = por %p66, %p67
    %p69 = scmp.ne.s32.totalorder %s55, %s56
    %p70 = scmp.eq.s32.totalorder %s22, 1
    %p71 = por %p69, %p70
    %p73 = scmp.ne.s32.totalorder %s56, %s72
    %p74 = scmp.eq.s32.totalorder %s22, 0
    %p75 = por %p73, %p74
    %s77 = sadd.s32 %s76, 1
    %p80 = scmp.eq.s32.totalorder %s16, 1
    %p81 = scmp.ne.s32.totalorder %s76, %s78
    %p82 = scmp.eq.s32.totalorder %s16, 0
    %p83 = por %p81, %p82
    %p84 = scmp.ne.s32.totalorder %s76, %s78
    %p85 = scmp.eq.s32.totalorder %s21, 1
    %p86 = por %p84, %p85
    %p87 = scmp.ne.s32.totalorder %s78, %s79
    %p88 = scmp.eq.s32.totalorder %s21, 0
    %p89 = por %p87, %p88
    %p90 = scmp.ne.s32.totalorder %s78, %s79
    %p91 = scmp.eq.s32.totalorder %s22, 1
    %p92 = por %p90, %p91
    %p94 = scmp.ne.s32.totalorder %s79, %s93
    %p95 = scmp.eq.s32.totalorder %s22, 0
    %p96 = por %p94, %p95
    %s98 = sadd.s32 %s97, 1
    %p101 = scmp.eq.s32.totalorder %s16, 1
    %p102 = scmp.ne.s32.totalorder %s97, %s99
    %p103 = scmp.eq.s32.totalorder %s16, 0
    %p104 = por %p102, %p103
    %p105 = scmp.ne.s32.totalorder %s97, %s99
    %p106 = scmp.eq.s32.totalorder %s21, 1
    %p107 = por %p105, %p106
    %p108 = scmp.ne.s32.totalorder %s99, %s100
    %p109 = scmp.eq.s32.totalorder %s21, 0
    %p110 = por %p108, %p109
    %p111 = scmp.ne.s32.totalorder %s99, %s100
    %p112 = scmp.eq.s32.totalorder %s22, 1
    %p113 = por %p111, %p112
    %p115 = scmp.ne.s32.totalorder %s100, %s114
    %p116 = scmp.eq.s32.totalorder %s22, 0
    %p117 = por %p115, %p116
    %s119 = sadd.s32 %s118, 1
    %p122 = scmp.eq.s32.totalorder %s16, 1
    %p123 = scmp.ne.s32.totalorder %s118, %s120
    %p124 = scmp.eq.s32.totalorder %s16, 0
    %p125 = por %p123, %p124
    %p126 = scmp.ne.s32.totalorder %s118, %s120
    %p127 = scmp.eq.s32.totalorder %s21, 1
    %p128 = por %p126, %p127
    %p129 = scmp.ne.s32.totalorder %s120, %s121
    %p130 = scmp.eq.s32.totalorder %s21, 0
    %p131 = por %p129, %p130
    %p132 = scmp.ne.s32.totalorder %s120, %s121
    %p133 = scmp.eq.s32.totalorder %s22, 1
    %p134 = por %p132, %p133
    %p136 = scmp.ne.s32.totalorder %s121, %s135
    %p137 = scmp.eq.s32.totalorder %s22, 0
    %p138 = por %p136, %p137
    %s140 = sadd.s32 %s139, 1
    %p143 = scmp.eq.s32.totalorder %s16, 1
    %p144 = scmp.ne.s32.totalorder %s139, %s141
    %p145 = scmp.eq.s32.totalorder %s16, 0
    %p146 = por %p144, %p145
    %p147 = scmp.ne.s32.totalorder %s139, %s141
    %p148 = scmp.eq.s32.totalorder %s21, 1
    %p149 = por %p147, %p148
    %p150 = scmp.ne.s32.totalorder %s141, %s142
    %p151 = scmp.eq.s32.totalorder %s21, 0
    %p152 = por %p150, %p151
    %p153 = scmp.ne.s32.totalorder %s141, %s142
    %p154 = scmp.eq.s32.totalorder %s22, 1
    %p155 = por %p153, %p154
    %p157 = scmp.ne.s32.totalorder %s142, %s156
    %p158 = scmp.eq.s32.totalorder %s22, 0
    %p159 = por %p157, %p158
    %s161 = sadd.s32 %s160, 1
    %p164 = scmp.eq.s32.totalorder %s16, 1
    %p165 = scmp.ne.s32.totalorder %s160, %s162
    %p166 = scmp.eq.s32.totalorder %s16, 0
    %p167 = por %p165, %p166
    %p168 = scmp.ne.s32.totalorder %s160, %s162
    %p169 = scmp.eq.s32.totalorder %s21, 1
    %p170 = por %p168, %p169
    %p171 = scmp.ne.s32.totalorder %s162, %s163
    %p172 = scmp.eq.s32.totalorder %s21, 0
    %p173 = por %p171, %p172
    %p174 = scmp.ne.s32.totalorder %s162, %s163
    %p175 = scmp.eq.s32.totalorder %s22, 1
    %p176 = por %p174, %p175
    %p178 = scmp.ne.s32.totalorder %s163, %s177
    %p179 = scmp.eq.s32.totalorder %s22, 0
    %p180 = por %p178, %p179
    %s182 = sadd.s32 %s181, 1
    %p185 = scmp.eq.s32.totalorder %s16, 1
    %p186 = scmp.ne.s32.totalorder %s181, %s183
    %p187 = scmp.eq.s32.totalorder %s16, 0
    %p188 = por %p186, %p187
    %p189 = scmp.ne.s32.totalorder %s181, %s183
    %p190 = scmp.eq.s32.totalorder %s21, 1
    %p191 = por %p189, %p190
    %p192 = scmp.ne.s32.totalorder %s183, %s184
    %p193 = scmp.eq.s32.totalorder %s21, 0
    %p194 = por %p192, %p193
    %p195 = scmp.ne.s32.totalorder %s183, %s184
    %p196 = scmp.eq.s32.totalorder %s22, 1
    %p197 = por %p195, %p196
    %p199 = scmp.ne.s32.totalorder %s184, %s198
    %p200 = scmp.eq.s32.totalorder %s22, 0
    %p201 = por %p199, %p200
    %s203 = sadd.s32 %s202, 1
    %p206 = scmp.eq.s32.totalorder %s16, 1
    %p207 = scmp.ne.s32.totalorder %s202, %s204
    %p208 = scmp.eq.s32.totalorder %s16, 0
    %p209 = por %p207, %p208
    %p210 = scmp.ne.s32.totalorder %s202, %s204
    %p211 = scmp.eq.s32.totalorder %s21, 1
    %p212 = por %p210, %p211
    %p213 = scmp.ne.s32.totalorder %s204, %s205
    %p214 = scmp.eq.s32.totalorder %s21, 0
    %p215 = por %p213, %p214
    %p216 = scmp.ne.s32.totalorder %s204, %s205
    %p217 = scmp.eq.s32.totalorder %s22, 1
    %p218 = por %p216, %p217
    %p220 = scmp.ne.s32.totalorder %s205, %s219
    %p221 = scmp.eq.s32.totalorder %s22, 0
    %p222 = por %p220, %p221
    %s224 = sadd.s32 %s223, 1
    %p227 = scmp.eq.s32.totalorder %s16, 1
    %p228 = scmp.ne.s32.totalorder %s223, %s225
    %p229 = scmp.eq.s32.totalorder %s16, 0
    %p230 = por %p228, %p229
    %p231 = scmp.ne.s32.totalorder %s223, %s225
    %p232 = scmp.eq.s32.totalorder %s21, 1
    %p233 = por %p231, %p232
    %p234 = scmp.ne.s32.totalorder %s225, %s226
    %p235 = scmp.eq.s32.totalorder %s21, 0
    %p236 = por %p234, %p235
    %p237 = scmp.ne.s32.totalorder %s225, %s226
    %p238 = scmp.eq.s32.totalorder %s22, 1
    %p239 = por %p237, %p238
    %p241 = scmp.ne.s32.totalorder %s226, %s240
    %p242 = scmp.eq.s32.totalorder %s22, 0
    %p243 = por %p241, %p242
    %s244 = ssub.s32 %s16, %s23
    %p245 = scmp.eq.s32.totalorder %s244, 0
    %s247 = sadd.s32 %s246, 1
    %s248 = scalar_select %p245, %s246, %s247
    %p251 = pneg %p245
    %p252 = scmp.eq.s32.totalorder %s16, 1
    %p253 = por %p251, %p252
    %p254 = scmp.ne.s32.totalorder %s246, %s249
    %p255 = scmp.eq.s32.totalorder %s16, 0
    %p256 = por %p254, %p255
    %p257 = scmp.ne.s32.totalorder %s246, %s249
    %p258 = scmp.eq.s32.totalorder %s21, 1
    %p259 = por %p257, %p258
    %p260 = scmp.ne.s32.totalorder %s249, %s250
    %p261 = scmp.eq.s32.totalorder %s21, 0
    %p262 = por %p260, %p261
    %p263 = scmp.ne.s32.totalorder %s249, %s250
    %p264 = scmp.eq.s32.totalorder %s22, 1
    %p265 = por %p263, %p264
    %p267 = scmp.ne.s32.totalorder %s250, %s266
    %p268 = scmp.eq.s32.totalorder %s22, 0
    %p269 = por %p267, %p268
    %p270 = scmp.le.s32.totalorder 1, %s16
    %p271 = scmp.lt.s32.totalorder %s16, 3
    %p272 = pnand %p270, %p271
    %p273 = pneg %p272
    // Predicated region
    $region9: #{intp_linear_layer1_forward.1} parent=5 // pred_check
      _
    $region10: #{intp_linear_layer1_forward.1} parent=5 // pred_check_branch
      %275 = sbr.rel (%p272) target = $region12
    $region11: #{intp_linear_layer1_forward.1} parent=5 // pred_region
      %s276 = ssub.s32 %s16, 1
      // Predicated region
      $region13: #{intp_linear_layer1_forward.1} parent=11 // pred_check
        %p277 = pneg %p89
      $region14: #{intp_linear_layer1_forward.1} parent=11 // pred_check_branch
        %279 = sbr.rel (%p277) target = $region16
      $region15: #{intp_linear_layer1_forward.1} parent=11 // pred_region
        _
      $region16: #{intp_linear_layer1_forward.1} parent=11 // pred_fallthru
        _
      // Predicated region
      $region17: #{intp_linear_layer1_forward.1} parent=11 // pred_check
        %p280 = pneg %p110
      $region18: #{intp_linear_layer1_forward.1} parent=11 // pred_check_branch
        %282 = sbr.rel (%p280) target = $region20
      $region19: #{intp_linear_layer1_forward.1} parent=11 // pred_region
        _
      $region20: #{intp_linear_layer1_forward.1} parent=11 // pred_fallthru
        _
      // Predicated region
      $region21: #{intp_linear_layer1_forward.1} parent=11 // pred_check
        %p283 = pneg %p131
      $region22: #{intp_linear_layer1_forward.1} parent=11 // pred_check_branch
        %285 = sbr.rel (%p283) target = $region24
      $region23: #{intp_linear_layer1_forward.1} parent=11 // pred_region
        _
      $region24: #{intp_linear_layer1_forward.1} parent=11 // pred_fallthru
        _
      // Predicated region
      $region25: #{intp_linear_layer1_forward.1} parent=11 // pred_check
        %p286 = pneg %p152
      $region26: #{intp_linear_layer1_forward.1} parent=11 // pred_check_branch
        %288 = sbr.rel (%p286) target = $region28
      $region27: #{intp_linear_layer1_forward.1} parent=11 // pred_region
        _
      $region28: #{intp_linear_layer1_forward.1} parent=11 // pred_fallthru
        _
      // Predicated region
      $region29: #{intp_linear_layer1_forward.1} parent=11 // pred_check
        %p289 = pneg %p173
      $region30: #{intp_linear_layer1_forward.1} parent=11 // pred_check_branch
        %291 = sbr.rel (%p289) target = $region32
      $region31: #{intp_linear_layer1_forward.1} parent=11 // pred_region
        _
      $region32: #{intp_linear_layer1_forward.1} parent=11 // pred_fallthru
        _
      // Predicated region
      $region33: #{intp_linear_layer1_forward.1} parent=11 // pred_check
        %p292 = pneg %p194
      $region34: #{intp_linear_layer1_forward.1} parent=11 // pred_check_branch
        %294 = sbr.rel (%p292) target = $region36
      $region35: #{intp_linear_layer1_forward.1} parent=11 // pred_region
        _
      $region36: #{intp_linear_layer1_forward.1} parent=11 // pred_fallthru
        _
      // Predicated region
      $region37: #{intp_linear_layer1_forward.1} parent=11 // pred_check
        %p295 = pneg %p215
      $region38: #{intp_linear_layer1_forward.1} parent=11 // pred_check_branch
        %297 = sbr.rel (%p295) target = $region40
      $region39: #{intp_linear_layer1_forward.1} parent=11 // pred_region
        _
      $region40: #{intp_linear_layer1_forward.1} parent=11 // pred_fallthru
        _
      // Predicated region
      $region41: #{intp_linear_layer1_forward.1} parent=11 // pred_check
        %p298 = pneg %p236
      $region42: #{intp_linear_layer1_forward.1} parent=11 // pred_check_branch
        %300 = sbr.rel (%p298) target = $region44
      $region43: #{intp_linear_layer1_forward.1} parent=11 // pred_region
        _
      $region44: #{intp_linear_layer1_forward.1} parent=11 // pred_fallthru
        _
    $region12: #{intp_linear_layer1_forward.1} parent=5 // pred_fallthru
      _
    %p301 = scmp.lt.s32.totalorder %s16, 2
    // Predicated region
    $region45: #{intp_linear_layer1_forward.1} parent=5 // pred_check
      %p302 = pneg %p301
    $region46: #{intp_linear_layer1_forward.1} parent=5 // pred_check_branch
      %304 = sbr.rel (%p302) target = $region48
    $region47: #{intp_linear_layer1_forward.1} parent=5 // pred_region
      // Predicated region
      $region49: #{intp_linear_layer1_forward.1} parent=47 // pred_check
        %p305 = pneg %p36
      $region50: #{intp_linear_layer1_forward.1} parent=47 // pred_check_branch
        %307 = sbr.rel (%p305) target = $region52
      $region51: #{intp_linear_layer1_forward.1} parent=47 // pred_region
        %s308 = smul.u32 6, %s16
        %p309 = scmp.lt.s32.totalorder %s308, 11
        %s310 = scalar_select %p309, %s308, 11
        %s311 = smul.addr %s310, 8
        %s312 = scalar_lea.vmem %s0, %s311
        %s313 = smul.u32 6, %s16
      $region52: #{intp_linear_layer1_forward.1} parent=47 // pred_fallthru
        _
      // Predicated region
      $region53: #{intp_linear_layer1_forward.1} parent=47 // pred_check
        %p314 = pneg %p62
      $region54: #{intp_linear_layer1_forward.1} parent=47 // pred_check_branch
        %316 = sbr.rel (%p314) target = $region56
      $region55: #{intp_linear_layer1_forward.1} parent=47 // pred_region
        %s317 = smul.u32 6, %s16
        %p318 = scmp.lt.s32.totalorder %s317, 11
        %s319 = scalar_select %p318, %s317, 11
        %s320 = smul.addr %s319, 8
        %s321 = scalar_lea.vmem %s1, %s320
        %s322 = smul.u32 6, %s16
      $region56: #{intp_linear_layer1_forward.1} parent=47 // pred_fallthru
        _
    $region48: #{intp_linear_layer1_forward.1} parent=5 // pred_fallthru
      _
    %p323 = scmp.le.s32.totalorder 1, %s16
    %p324 = scmp.lt.s32.totalorder %s16, 3
    %p325 = pnand %p323, %p324
    %p326 = pneg %p325
    // Predicated region
    $region57: #{intp_linear_layer1_forward.1} parent=5 // pred_check
      _
    $region58: #{intp_linear_layer1_forward.1} parent=5 // pred_check_branch
      %328 = sbr.rel (%p325) target = $region60
    $region59: #{intp_linear_layer1_forward.1} parent=5 // pred_region
      %s329 = ssub.s32 %s16, 1
      %s330 = smul.u32 6, %s21
      %p331 = scmp.lt.s32.totalorder %s330, 11
      %s332 = scalar_select %p331, %s330, 11
      %s333 = smul.addr %s332, 8
      %s334 = scalar_lea.vmem %s0, %s333
      %p335 = pneg %p42
      %p336 = pneg %p39
      %s337 = smul.u32 6, %s21
      %p338 = scmp.lt.s32.totalorder %s337, 11
      %s339 = scalar_select %p338, %s337, 11
      %s340 = smul.addr %s339, 8
      %s341 = scalar_lea.vmem %s1, %s340
      %p342 = pneg %p68
      %p343 = pneg %p65
      %p344 = pneg %p89
      %p345 = pneg %p86
      %p346 = pneg %p110
      %p347 = pneg %p107
      %p348 = pneg %p131
      %p349 = pneg %p128
      %p350 = pneg %p152
      %p351 = pneg %p149
      %p352 = pneg %p173
      %p353 = pneg %p170
      %p354 = pneg %p194
      %p355 = pneg %p191
      %p356 = pneg %p215
      %p357 = pneg %p212
      %p358 = pneg %p236
      %p359 = pneg %p233
      %p360 = pneg %p262
      %p361 = pneg %p259
      %p362 = scmp.lt.s32.totalorder %s21, 1
      %s363 = scalar_select %p362, %s21, 1
      %s364 = smul.addr %s363, 8
      %s365 = scalar_lea.vmem %s10, %s364
      %s366 = smul.u32 6, %s21
      %p367 = scmp.lt.s32.totalorder %s366, 11
      %s368 = scalar_select %p367, %s366, 11
      %s369 = smul.addr %s368, 8
      %s370 = scalar_lea.vmem %s0, %s369
      %s371 = smul.u32 6, %s21
      %s372 = smul.u32 6, %s21
      %p373 = scmp.lt.s32.totalorder %s372, 11
      %s374 = scalar_select %p373, %s372, 11
      %s375 = smul.addr %s374, 8
      %s376 = scalar_lea.vmem %s1, %s375
      %s377 = smul.u32 6, %s21
      %p378 = scmp.lt.s32.totalorder %s21, 1
      %s379 = scalar_select %p378, %s21, 1
      %s380 = smul.addr %s379, 8
      %s381 = scalar_lea.vmem %s10, %s380
      %v382 = vld [vmem:[%s370] sm:$0xff]
      %v383 = vld [vmem:[%s370 + $0x8] sm:$0xff]
      %v384 = vld [vmem:[%s370 + $0x10] sm:$0xff]
      %v385 = vld [vmem:[%s370 + $0x18] sm:$0xff]
      %v386 = vld [vmem:[%s370 + $0x20] sm:$0xff]
      %v387 = vld [vmem:[%s370 + $0x28] sm:$0xff]
      %v388 = vld [vmem:[%s2] sm:$0xff]
      %v389 = vld [vmem:[%s2 + $0x8] sm:$0xff]
      %v390 = vld [vmem:[%s2 + $0x10] sm:$0xff]
      %v391 = vld [vmem:[%s2 + $0x18] sm:$0xff]
      %v392 = vld [vmem:[%s3] sm:$0x1]
      %v394 = vlaneseq
      %v395 = vshrl.u32 %v394, 7
      %v396 = vsub.s32 0, %v395
      %v397 = vrot.slane %v392, %v396
      %vm399 = vcmask 261120
      %v401 = vsel %vm399, %v382, 0
      %v404 = vsel %vm399, %v383, 0
      %v407 = vsel %vm399, %v384, 0
      %v410 = vsel %vm399, %v385, 0
      %v413 = vsel %vm399, %v386, 0
      %v416 = vsel %vm399, %v387, 0
      %418 = vmatprep.subr.mxu0 0.0
      %419 = vmatpush1.msra.mxu0 0.0
      %420 = vmatprep.subr.mxu0 0.0
      %421 = vmatpush1.msra.mxu0 0.0
      %422 = vmatprep.subr.mxu0 0.0
      %423 = vmatpush1.msra.mxu0 0.0
      %424 = vmatprep.subr.mxu0 0.0
      %425 = vmatpush1.msra.mxu0 0.0
      %426 = vmatprep.subr.mxu0 0.0
      %427 = vmatpush1.msra.mxu0 0.0
      %428 = vmatprep.subr.mxu0 0.0
      %429 = vmatpush1.msra.mxu0 0.0
      %430 = vmatprep.subr.mxu0 0.0
      %431 = vmatpush1.msra.mxu0 0.0
      %432 = vmatprep.subr.mxu0 0.0
      %433 = vmatpush1.msra.mxu0 0.0
      %434 = vmatprep.subr.mxu0 0.0
      %435 = vmatpush1.msra.mxu0 0.0
      %436 = vmatprep.subr.mxu0 0.0
      %437 = vmatpush1.msra.mxu0 0.0
      %438 = vmatprep.subr.mxu0 0.0
      %439 = vmatpush1.msra.mxu0 0.0
      %440 = vmatprep.subr.mxu0 0.0
      %441 = vmatpush1.msra.mxu0 0.0
      %442 = vmatprep.subr.mxu0 0.0
      %443 = vmatpush1.msra.mxu0 %v391
      %444 = vmatprep.subr.mxu0 0.0
      %445 = vmatpush1.msra.mxu0 %v390
      %446 = vmatprep.subr.mxu0 0.0
      %447 = vmatpush1.msra.mxu0 %v389
      %448 = vmatprep.subr.mxu0 0.0
      %449 = vmatpush1.msra.mxu0 %v388
      %450 = vmatprep.subr.mxu0 0.0
      %451 = vmatpush2.msra.mxu0 0.0
      %452 = vmatprep.subr.mxu0 0.0
      %453 = vmatpush2.msra.mxu0 0.0
      %454 = vmatprep.subr.mxu0 0.0
      %455 = vmatpush2.msra.mxu0 0.0
      %456 = vmatprep.subr.mxu0 0.0
      %457 = vmatpush2.msra.mxu0 0.0
      %458 = vmatprep.subr.mxu0 0.0
      %459 = vmatpush2.msra.mxu0 0.0
      %460 = vmatprep.subr.mxu0 0.0
      %461 = vmatpush2.msra.mxu0 0.0
      %462 = vmatprep.subr.mxu0 0.0
      %463 = vmatpush2.msra.mxu0 0.0
      %464 = vmatprep.subr.mxu0 0.0
      %465 = vmatpush2.msra.mxu0 0.0
      %466 = vmatprep.subr.mxu0 0.0
      %467 = vmatpush2.msra.mxu0 0.0
      %468 = vmatprep.subr.mxu0 0.0
      %469 = vmatpush2.msra.mxu0 0.0
      %470 = vmatprep.subr.mxu0 0.0
      %471 = vmatpush2.msra.mxu0 0.0
      %472 = vmatprep.subr.mxu0 0.0
      %473 = vmatpush2.msra.mxu0 0.0
      %474 = vmatprep.subr.mxu0 0.0
      %475 = vmatpush2.msra.mxu0 0.0
      %476 = vmatprep.subr.mxu0 0.0
      %477 = vmatpush2.msra.mxu0 0.0
      %478 = vmatprep.subr.mxu0 0.0
      %479 = vmatpush2.msra.mxu0 0.0
      %480 = vmatprep.subr.mxu0 0.0
      %481 = vmatpush2.msra.mxu0 0.0
      %482 = vmatprep.mubr.f32.mxu0 0.0
      %483 = vmatmul.mubr.f32.gmra.mxu0 %v401
      %v484 = vpop.f32.mrf.mxu0
      %v485 = vadd.f32 %v397, %v484
      %v486 = vpop.f32.mrf.mxu0
      %487 = vmatprep.mubr.f32.mxu0 0.0
      %488 = vmatmul.mubr.f32.gmra.mxu0 %v404
      %v489 = vpop.f32.mrf.mxu0
      %v490 = vadd.f32 %v397, %v489
      %v491 = vpop.f32.mrf.mxu0
      %492 = vmatprep.mubr.f32.mxu0 0.0
      %493 = vmatmul.mubr.f32.gmra.mxu0 %v407
      %v494 = vpop.f32.mrf.mxu0
      %v495 = vadd.f32 %v397, %v494
      %v496 = vpop.f32.mrf.mxu0
      %497 = vmatprep.mubr.f32.mxu0 0.0
      %498 = vmatmul.mubr.f32.gmra.mxu0 %v410
      %v499 = vpop.f32.mrf.mxu0
      %v500 = vadd.f32 %v397, %v499
      %v501 = vpop.f32.mrf.mxu0
      %502 = vmatprep.mubr.f32.mxu0 0.0
      %503 = vmatmul.mubr.f32.gmra.mxu0 %v413
      %v504 = vpop.f32.mrf.mxu0
      %v505 = vadd.f32 %v397, %v504
      %v506 = vpop.f32.mrf.mxu0
      %507 = vmatprep.mubr.f32.mxu0 0.0
      %508 = vmatmul.mubr.f32.gmra.mxu0 %v416
      %v509 = vpop.f32.mrf.mxu0
      %v510 = vadd.f32 %v397, %v509
      %v511 = vpop.f32.mrf.mxu0
      %512 = vdwg.mxu0
      %vm513 = vcmp.gt.f32.partialorder %v485, 0.0
      %vm514 = vcmp.gt.f32.partialorder %v490, 0.0
      %vm515 = vcmp.gt.f32.partialorder %v495, 0.0
      %vm516 = vcmp.gt.f32.partialorder %v500, 0.0
      %vm517 = vcmp.gt.f32.partialorder %v505, 0.0
      %vm518 = vcmp.gt.f32.partialorder %v510, 0.0
      %v519 = vmul.f32 %v485, 0.01
      %v520 = vmul.f32 %v490, 0.01
      %v521 = vmul.f32 %v495, 0.01
      %v522 = vmul.f32 %v500, 0.01
      %v523 = vmul.f32 %v505, 0.01
      %v524 = vmul.f32 %v510, 0.01
      %v525 = vsel %vm513, %v485, %v519
      %v526 = vsel %vm514, %v490, %v520
      %v527 = vsel %vm515, %v495, %v521
      %v528 = vsel %vm516, %v500, %v522
      %v529 = vsel %vm517, %v505, %v523
      %v530 = vsel %vm518, %v510, %v524
      %v531 = vld [vmem:[%s4] sm:$0xff]
      %v532 = vld [vmem:[%s4 + $0x8] sm:$0xff]
      %v533 = vld [vmem:[%s4 + $0x10] sm:$0xff]
      %v534 = vld [vmem:[%s4 + $0x18] sm:$0xff]
      %v535 = vld [vmem:[%s5] sm:$0x1]
      %v537 = vlaneseq
      %v538 = vshrl.u32 %v537, 7
      %v539 = vsub.s32 0, %v538
      %v540 = vrot.slane %v535, %v539
      %v543 = vsel %vm399, %v525, 0
      %v546 = vsel %vm399, %v526, 0
      %v549 = vsel %vm399, %v527, 0
      %v552 = vsel %vm399, %v528, 0
      %v555 = vsel %vm399, %v529, 0
      %v558 = vsel %vm399, %v530, 0
      %560 = vmatprep.subr.mxu0 0.0
      %561 = vmatpush1.msra.mxu0 0.0
      %562 = vmatprep.subr.mxu0 0.0
      %563 = vmatpush1.msra.mxu0 0.0
      %564 = vmatprep.subr.mxu0 0.0
      %565 = vmatpush1.msra.mxu0 0.0
      %566 = vmatprep.subr.mxu0 0.0
      %567 = vmatpush1.msra.mxu0 0.0
      %568 = vmatprep.subr.mxu0 0.0
      %569 = vmatpush1.msra.mxu0 0.0
      %570 = vmatprep.subr.mxu0 0.0
      %571 = vmatpush1.msra.mxu0 0.0
      %572 = vmatprep.subr.mxu0 0.0
      %573 = vmatpush1.msra.mxu0 0.0
      %574 = vmatprep.subr.mxu0 0.0
      %575 = vmatpush1.msra.mxu0 0.0
      %576 = vmatprep.subr.mxu0 0.0
      %577 = vmatpush1.msra.mxu0 0.0
      %578 = vmatprep.subr.mxu0 0.0
      %579 = vmatpush1.msra.mxu0 0.0
      %580 = vmatprep.subr.mxu0 0.0
      %581 = vmatpush1.msra.mxu0 0.0
      %582 = vmatprep.subr.mxu0 0.0
      %583 = vmatpush1.msra.mxu0 0.0
      %584 = vmatprep.subr.mxu0 0.0
      %585 = vmatpush1.msra.mxu0 %v534
      %586 = vmatprep.subr.mxu0 0.0
      %587 = vmatpush1.msra.mxu0 %v533
      %588 = vmatprep.subr.mxu0 0.0
      %589 = vmatpush1.msra.mxu0 %v532
      %590 = vmatprep.subr.mxu0 0.0
      %591 = vmatpush1.msra.mxu0 %v531
      %592 = vmatprep.subr.mxu0 0.0
      %593 = vmatpush2.msra.mxu0 0.0
      %594 = vmatprep.subr.mxu0 0.0
      %595 = vmatpush2.msra.mxu0 0.0
      %596 = vmatprep.subr.mxu0 0.0
      %597 = vmatpush2.msra.mxu0 0.0
      %598 = vmatprep.subr.mxu0 0.0
      %599 = vmatpush2.msra.mxu0 0.0
      %600 = vmatprep.subr.mxu0 0.0
      %601 = vmatpush2.msra.mxu0 0.0
      %602 = vmatprep.subr.mxu0 0.0
      %603 = vmatpush2.msra.mxu0 0.0
      %604 = vmatprep.subr.mxu0 0.0
      %605 = vmatpush2.msra.mxu0 0.0
      %606 = vmatprep.subr.mxu0 0.0
      %607 = vmatpush2.msra.mxu0 0.0
      %608 = vmatprep.subr.mxu0 0.0
      %609 = vmatpush2.msra.mxu0 0.0
      %610 = vmatprep.subr.mxu0 0.0
      %611 = vmatpush2.msra.mxu0 0.0
      %612 = vmatprep.subr.mxu0 0.0
      %613 = vmatpush2.msra.mxu0 0.0
      %614 = vmatprep.subr.mxu0 0.0
      %615 = vmatpush2.msra.mxu0 0.0
      %616 = vmatprep.subr.mxu0 0.0
      %617 = vmatpush2.msra.mxu0 0.0
      %618 = vmatprep.subr.mxu0 0.0
      %619 = vmatpush2.msra.mxu0 0.0
      %620 = vmatprep.subr.mxu0 0.0
      %621 = vmatpush2.msra.mxu0 0.0
      %622 = vmatprep.subr.mxu0 0.0
      %623 = vmatpush2.msra.mxu0 0.0
      %624 = vmatprep.mubr.f32.mxu0 0.0
      %625 = vmatmul.mubr.f32.gmra.mxu0 %v543
      %v626 = vpop.f32.mrf.mxu0
      %v627 = vadd.f32 %v540, %v626
      %v628 = vpop.f32.mrf.mxu0
      %629 = vmatprep.mubr.f32.mxu0 0.0
      %630 = vmatmul.mubr.f32.gmra.mxu0 %v546
      %v631 = vpop.f32.mrf.mxu0
      %v632 = vadd.f32 %v540, %v631
      %v633 = vpop.f32.mrf.mxu0
      %634 = vmatprep.mubr.f32.mxu0 0.0
      %635 = vmatmul.mubr.f32.gmra.mxu0 %v549
      %v636 = vpop.f32.mrf.mxu0
      %v637 = vadd.f32 %v540, %v636
      %v638 = vpop.f32.mrf.mxu0
      %639 = vmatprep.mubr.f32.mxu0 0.0
      %640 = vmatmul.mubr.f32.gmra.mxu0 %v552
      %v641 = vpop.f32.mrf.mxu0
      %v642 = vadd.f32 %v540, %v641
      %v643 = vpop.f32.mrf.mxu0
      %644 = vmatprep.mubr.f32.mxu0 0.0
      %645 = vmatmul.mubr.f32.gmra.mxu0 %v555
      %v646 = vpop.f32.mrf.mxu0
      %v647 = vadd.f32 %v540, %v646
      %v648 = vpop.f32.mrf.mxu0
      %649 = vmatprep.mubr.f32.mxu0 0.0
      %650 = vmatmul.mubr.f32.gmra.mxu0 %v558
      %v651 = vpop.f32.mrf.mxu0
      %v652 = vadd.f32 %v540, %v651
      %v653 = vpop.f32.mrf.mxu0
      %654 = vdwg.mxu0
      %v655 = vxor.u32 %v627, 2147483648
      %v656 = vxor.u32 %v632, 2147483648
      %v657 = vxor.u32 %v637, 2147483648
      %v658 = vxor.u32 %v642, 2147483648
      %v659 = vxor.u32 %v647, 2147483648
      %v660 = vxor.u32 %v652, 2147483648
      %v661 = vmul.f32 %v655, 1.442695
      %v662 = vpow.pop %v661
      %v663 = vmul.f32 %v656, 1.442695
      %v664 = vpow.pop %v663
      %v665 = vmul.f32 %v657, 1.442695
      %v666 = vpow.pop %v665
      %v667 = vmul.f32 %v658, 1.442695
      %v668 = vpow.pop %v667
      %v669 = vmul.f32 %v659, 1.442695
      %v670 = vpow.pop %v669
      %v671 = vmul.f32 %v660, 1.442695
      %v672 = vpow.pop %v671
      %v673 = vadd.f32 %v662, 1.0
      %v674 = vadd.f32 %v664, 1.0
      %v675 = vadd.f32 %v666, 1.0
      %v676 = vadd.f32 %v668, 1.0
      %v677 = vadd.f32 %v670, 1.0
      %v678 = vadd.f32 %v672, 1.0
      %v679 = vrcp.pop %v673
      %v680 = vmul.f32 1.0, %v679
      %v681 = vrcp.pop %v674
      %v682 = vmul.f32 1.0, %v681
      %v683 = vrcp.pop %v675
      %v684 = vmul.f32 1.0, %v683
      %v685 = vrcp.pop %v676
      %v686 = vmul.f32 1.0, %v685
      %v687 = vrcp.pop %v677
      %v688 = vmul.f32 1.0, %v687
      %v689 = vrcp.pop %v678
      %v690 = vmul.f32 1.0, %v689
      %v691 = vld [vmem:[%s6] sm:$0xff]
      %v692 = vld [vmem:[%s6 + $0x8] sm:$0xff]
      %v693 = vld [vmem:[%s6 + $0x10] sm:$0xff]
      %v694 = vld [vmem:[%s6 + $0x18] sm:$0xff]
      %v695 = vld [vmem:[%s7] sm:$0x1]
      %v697 = vlaneseq
      %v698 = vshrl.u32 %v697, 7
      %v699 = vsub.s32 0, %v698
      %v700 = vrot.slane %v695, %v699
      %702 = vmatprep.subr.mxu0 0.0
      %703 = vmatpush1.msra.mxu0 0.0
      %704 = vmatprep.subr.mxu0 0.0
      %705 = vmatpush1.msra.mxu0 0.0
      %706 = vmatprep.subr.mxu0 0.0
      %707 = vmatpush1.msra.mxu0 0.0
      %708 = vmatprep.subr.mxu0 0.0
      %709 = vmatpush1.msra.mxu0 0.0
      %710 = vmatprep.subr.mxu0 0.0
      %711 = vmatpush1.msra.mxu0 0.0
      %712 = vmatprep.subr.mxu0 0.0
      %713 = vmatpush1.msra.mxu0 0.0
      %714 = vmatprep.subr.mxu0 0.0
      %715 = vmatpush1.msra.mxu0 0.0
      %716 = vmatprep.subr.mxu0 0.0
      %717 = vmatpush1.msra.mxu0 0.0
      %718 = vmatprep.subr.mxu0 0.0
      %719 = vmatpush1.msra.mxu0 0.0
      %720 = vmatprep.subr.mxu0 0.0
      %721 = vmatpush1.msra.mxu0 0.0
      %722 = vmatprep.subr.mxu0 0.0
      %723 = vmatpush1.msra.mxu0 0.0
      %724 = vmatprep.subr.mxu0 0.0
      %725 = vmatpush1.msra.mxu0 0.0
      %726 = vmatprep.subr.mxu0 0.0
      %727 = vmatpush1.msra.mxu0 %v694
      %728 = vmatprep.subr.mxu0 0.0
      %729 = vmatpush1.msra.mxu0 %v693
      %730 = vmatprep.subr.mxu0 0.0
      %731 = vmatpush1.msra.mxu0 %v692
      %732 = vmatprep.subr.mxu0 0.0
      %733 = vmatpush1.msra.mxu0 %v691
      %734 = vmatprep.subr.mxu0 0.0
      %735 = vmatpush2.msra.mxu0 0.0
      %736 = vmatprep.subr.mxu0 0.0
      %737 = vmatpush2.msra.mxu0 0.0
      %738 = vmatprep.subr.mxu0 0.0
      %739 = vmatpush2.msra.mxu0 0.0
      %740 = vmatprep.subr.mxu0 0.0
      %741 = vmatpush2.msra.mxu0 0.0
      %742 = vmatprep.subr.mxu0 0.0
      %743 = vmatpush2.msra.mxu0 0.0
      %744 = vmatprep.subr.mxu0 0.0
      %745 = vmatpush2.msra.mxu0 0.0
      %746 = vmatprep.subr.mxu0 0.0
      %747 = vmatpush2.msra.mxu0 0.0
      %748 = vmatprep.subr.mxu0 0.0
      %749 = vmatpush2.msra.mxu0 0.0
      %750 = vmatprep.subr.mxu0 0.0
      %751 = vmatpush2.msra.mxu0 0.0
      %752 = vmatprep.subr.mxu0 0.0
      %753 = vmatpush2.msra.mxu0 0.0
      %754 = vmatprep.subr.mxu0 0.0
      %755 = vmatpush2.msra.mxu0 0.0
      %756 = vmatprep.subr.mxu0 0.0
      %757 = vmatpush2.msra.mxu0 0.0
      %758 = vmatprep.subr.mxu0 0.0
      %759 = vmatpush2.msra.mxu0 0.0
      %760 = vmatprep.subr.mxu0 0.0
      %761 = vmatpush2.msra.mxu0 0.0
      %762 = vmatprep.subr.mxu0 0.0
      %763 = vmatpush2.msra.mxu0 0.0
      %764 = vmatprep.subr.mxu0 0.0
      %765 = vmatpush2.msra.mxu0 0.0
      %766 = vmatprep.mubr.f32.mxu0 0.0
      %767 = vmatmul.mubr.f32.gmra.mxu0 %v401
      %v768 = vpop.f32.mrf.mxu0
      %v769 = vadd.f32 %v700, %v768
      %v770 = vpop.f32.mrf.mxu0
      %771 = vmatprep.mubr.f32.mxu0 0.0
      %772 = vmatmul.mubr.f32.gmra.mxu0 %v404
      %v773 = vpop.f32.mrf.mxu0
      %v774 = vadd.f32 %v700, %v773
      %v775 = vpop.f32.mrf.mxu0
      %776 = vmatprep.mubr.f32.mxu0 0.0
      %777 = vmatmul.mubr.f32.gmra.mxu0 %v407
      %v778 = vpop.f32.mrf.mxu0
      %v779 = vadd.f32 %v700, %v778
      %v780 = vpop.f32.mrf.mxu0
      %781 = vmatprep.mubr.f32.mxu0 0.0
      %782 = vmatmul.mubr.f32.gmra.mxu0 %v410
      %v783 = vpop.f32.mrf.mxu0
      %v784 = vadd.f32 %v700, %v783
      %v785 = vpop.f32.mrf.mxu0
      %786 = vmatprep.mubr.f32.mxu0 0.0
      %787 = vmatmul.mubr.f32.gmra.mxu0 %v413
      %v788 = vpop.f32.mrf.mxu0
      %v789 = vadd.f32 %v700, %v788
      %v790 = vpop.f32.mrf.mxu0
      %791 = vmatprep.mubr.f32.mxu0 0.0
      %792 = vmatmul.mubr.f32.gmra.mxu0 %v416
      %v793 = vpop.f32.mrf.mxu0
      %v794 = vadd.f32 %v700, %v793
      %v795 = vpop.f32.mrf.mxu0
      %796 = vdwg.mxu0
      %vm797 = vcmp.gt.f32.partialorder %v769, 0.0
      %vm798 = vcmp.gt.f32.partialorder %v774, 0.0
      %vm799 = vcmp.gt.f32.partialorder %v779, 0.0
      %vm800 = vcmp.gt.f32.partialorder %v784, 0.0
      %vm801 = vcmp.gt.f32.partialorder %v789, 0.0
      %vm802 = vcmp.gt.f32.partialorder %v794, 0.0
      %v803 = vmul.f32 %v769, 0.01
      %v804 = vmul.f32 %v774, 0.01
      %v805 = vmul.f32 %v779, 0.01
      %v806 = vmul.f32 %v784, 0.01
      %v807 = vmul.f32 %v789, 0.01
      %v808 = vmul.f32 %v794, 0.01
      %v809 = vsel %vm797, %v769, %v803
      %v810 = vsel %vm798, %v774, %v804
      %v811 = vsel %vm799, %v779, %v805
      %v812 = vsel %vm800, %v784, %v806
      %v813 = vsel %vm801, %v789, %v807
      %v814 = vsel %vm802, %v794, %v808
      %v815 = vld [vmem:[%s8] sm:$0xff]
      %v816 = vld [vmem:[%s8 + $0x8] sm:$0xff]
      %v817 = vld [vmem:[%s8 + $0x10] sm:$0xff]
      %v818 = vld [vmem:[%s8 + $0x18] sm:$0xff]
      %v819 = vld [vmem:[%s9] sm:$0x1]
      %v821 = vlaneseq
      %v822 = vshrl.u32 %v821, 7
      %v823 = vsub.s32 0, %v822
      %v824 = vrot.slane %v819, %v823
      %v827 = vsel %vm399, %v809, 0
      %v830 = vsel %vm399, %v810, 0
      %v833 = vsel %vm399, %v811, 0
      %v836 = vsel %vm399, %v812, 0
      %v839 = vsel %vm399, %v813, 0
      %v842 = vsel %vm399, %v814, 0
      %844 = vmatprep.subr.mxu0 0.0
      %845 = vmatpush1.msra.mxu0 0.0
      %846 = vmatprep.subr.mxu0 0.0
      %847 = vmatpush1.msra.mxu0 0.0
      %848 = vmatprep.subr.mxu0 0.0
      %849 = vmatpush1.msra.mxu0 0.0
      %850 = vmatprep.subr.mxu0 0.0
      %851 = vmatpush1.msra.mxu0 0.0
      %852 = vmatprep.subr.mxu0 0.0
      %853 = vmatpush1.msra.mxu0 0.0
      %854 = vmatprep.subr.mxu0 0.0
      %855 = vmatpush1.msra.mxu0 0.0
      %856 = vmatprep.subr.mxu0 0.0
      %857 = vmatpush1.msra.mxu0 0.0
      %858 = vmatprep.subr.mxu0 0.0
      %859 = vmatpush1.msra.mxu0 0.0
      %860 = vmatprep.subr.mxu0 0.0
      %861 = vmatpush1.msra.mxu0 0.0
      %862 = vmatprep.subr.mxu0 0.0
      %863 = vmatpush1.msra.mxu0 0.0
      %864 = vmatprep.subr.mxu0 0.0
      %865 = vmatpush1.msra.mxu0 0.0
      %866 = vmatprep.subr.mxu0 0.0
      %867 = vmatpush1.msra.mxu0 0.0
      %868 = vmatprep.subr.mxu0 0.0
      %869 = vmatpush1.msra.mxu0 %v818
      %870 = vmatprep.subr.mxu0 0.0
      %871 = vmatpush1.msra.mxu0 %v817
      %872 = vmatprep.subr.mxu0 0.0
      %873 = vmatpush1.msra.mxu0 %v816
      %874 = vmatprep.subr.mxu0 0.0
      %875 = vmatpush1.msra.mxu0 %v815
      %876 = vmatprep.subr.mxu0 0.0
      %877 = vmatpush2.msra.mxu0 0.0
      %878 = vmatprep.subr.mxu0 0.0
      %879 = vmatpush2.msra.mxu0 0.0
      %880 = vmatprep.subr.mxu0 0.0
      %881 = vmatpush2.msra.mxu0 0.0
      %882 = vmatprep.subr.mxu0 0.0
      %883 = vmatpush2.msra.mxu0 0.0
      %884 = vmatprep.subr.mxu0 0.0
      %885 = vmatpush2.msra.mxu0 0.0
      %886 = vmatprep.subr.mxu0 0.0
      %887 = vmatpush2.msra.mxu0 0.0
      %888 = vmatprep.subr.mxu0 0.0
      %889 = vmatpush2.msra.mxu0 0.0
      %890 = vmatprep.subr.mxu0 0.0
      %891 = vmatpush2.msra.mxu0 0.0
      %892 = vmatprep.subr.mxu0 0.0
      %893 = vmatpush2.msra.mxu0 0.0
      %894 = vmatprep.subr.mxu0 0.0
      %895 = vmatpush2.msra.mxu0 0.0
      %896 = vmatprep.subr.mxu0 0.0
      %897 = vmatpush2.msra.mxu0 0.0
      %898 = vmatprep.subr.mxu0 0.0
      %899 = vmatpush2.msra.mxu0 0.0
      %900 = vmatprep.subr.mxu0 0.0
      %901 = vmatpush2.msra.mxu0 0.0
      %902 = vmatprep.subr.mxu0 0.0
      %903 = vmatpush2.msra.mxu0 0.0
      %904 = vmatprep.subr.mxu0 0.0
      %905 = vmatpush2.msra.mxu0 0.0
      %906 = vmatprep.subr.mxu0 0.0
      %907 = vmatpush2.msra.mxu0 0.0
      %908 = vmatprep.mubr.f32.mxu0 0.0
      %909 = vmatmul.mubr.f32.gmra.mxu0 %v827
      %v910 = vpop.f32.mrf.mxu0
      %v911 = vadd.f32 %v824, %v910
      %v912 = vpop.f32.mrf.mxu0
      %913 = vmatprep.mubr.f32.mxu0 0.0
      %914 = vmatmul.mubr.f32.gmra.mxu0 %v830
      %v915 = vpop.f32.mrf.mxu0
      %v916 = vadd.f32 %v824, %v915
      %v917 = vpop.f32.mrf.mxu0
      %918 = vmatprep.mubr.f32.mxu0 0.0
      %919 = vmatmul.mubr.f32.gmra.mxu0 %v833
      %v920 = vpop.f32.mrf.mxu0
      %v921 = vadd.f32 %v824, %v920
      %v922 = vpop.f32.mrf.mxu0
      %923 = vmatprep.mubr.f32.mxu0 0.0
      %924 = vmatmul.mubr.f32.gmra.mxu0 %v836
      %v925 = vpop.f32.mrf.mxu0
      %v926 = vadd.f32 %v824, %v925
      %v927 = vpop.f32.mrf.mxu0
      %928 = vmatprep.mubr.f32.mxu0 0.0
      %929 = vmatmul.mubr.f32.gmra.mxu0 %v839
      %v930 = vpop.f32.mrf.mxu0
      %v931 = vadd.f32 %v824, %v930
      %v932 = vpop.f32.mrf.mxu0
      %933 = vmatprep.mubr.f32.mxu0 0.0
      %934 = vmatmul.mubr.f32.gmra.mxu0 %v842
      %v935 = vpop.f32.mrf.mxu0
      %v936 = vadd.f32 %v824, %v935
      %v937 = vpop.f32.mrf.mxu0
      %938 = vdwg.mxu0
      %v939 = vld [vmem:[%s376] sm:$0xff]
      %v940 = vld [vmem:[%s376 + $0x8] sm:$0xff]
      %v941 = vld [vmem:[%s376 + $0x10] sm:$0xff]
      %v942 = vld [vmem:[%s376 + $0x18] sm:$0xff]
      %v943 = vld [vmem:[%s376 + $0x20] sm:$0xff]
      %v944 = vld [vmem:[%s376 + $0x28] sm:$0xff]
      %946 = vset.pattern.permute.xlu0 0
      %947 = vperm.xlu0 %946, %v939
      %v948 = vpop.permute.xlu0 %947
      %951 = vset.pattern.permute.xlu0 0
      %952 = vperm.xlu0 %951, %v940
      %v953 = vpop.permute.xlu0 %952
      %956 = vset.pattern.permute.xlu0 0
      %957 = vperm.xlu0 %956, %v941
      %v958 = vpop.permute.xlu0 %957
      %961 = vset.pattern.permute.xlu0 0
      %962 = vperm.xlu0 %961, %v942
      %v963 = vpop.permute.xlu0 %962
      %966 = vset.pattern.permute.xlu0 0
      %967 = vperm.xlu0 %966, %v943
      %v968 = vpop.permute.xlu0 %967
      %971 = vset.pattern.permute.xlu0 0
      %972 = vperm.xlu0 %971, %v944
      %v973 = vpop.permute.xlu0 %972
      %v975 = vmul.f32 %v948, %v680
      %v976 = vmul.f32 %v953, %v682
      %v977 = vmul.f32 %v958, %v684
      %v978 = vmul.f32 %v963, %v686
      %v979 = vmul.f32 %v968, %v688
      %v980 = vmul.f32 %v973, %v690
      %v981 = vmul.f32 %v911, 0.16666667
      %v982 = vmul.f32 %v916, 0.16666667
      %v983 = vmul.f32 %v921, 0.16666667
      %v984 = vmul.f32 %v926, 0.16666667
      %v985 = vmul.f32 %v931, 0.16666667
      %v986 = vmul.f32 %v936, 0.16666667
      %v987 = vadd.f32 %v975, %v981
      %v988 = vadd.f32 %v976, %v982
      %v989 = vadd.f32 %v977, %v983
      %v990 = vadd.f32 %v978, %v984
      %v991 = vadd.f32 %v979, %v985
      %v992 = vadd.f32 %v980, %v986
      %v993 = vlaneseq
      %v994 = vshrl.u32 %v993, 7
      %v995 = vlaneseq
      %v996 = vand.u32 %v995, 127
      %v997 = vmul.u32 %v994, 6
      %vm998 = vcmp.ge.s32.totalorder %v996, %v997
      %v999 = vadd.s32 %v994, 1
      %v1000 = vmul.u32 %v999, 6
      %vm1001 = vcmp.lt.s32.totalorder %v996, %v1000
      %vm1002 = vmand %vm998, %vm1001
      %v1003 = vsel %vm1002, 1, 0
      %v1004 = vcvt.s32.f32 %v1003
      %vm1005 = vcmask 392192
      %v1007 = vsel %vm1005, %v1004, 0
      %1009 = vmatprep.subr.mxu0 0.0
      %1010 = vmatpush1.msra.mxu0 0.0
      %1011 = vmatprep.subr.mxu0 0.0
      %1012 = vmatpush1.msra.mxu0 0.0
      %1013 = vmatprep.subr.mxu0 0.0
      %1014 = vmatpush1.msra.mxu0 0.0
      %1015 = vmatprep.subr.mxu0 0.0
      %1016 = vmatpush1.msra.mxu0 0.0
      %1017 = vmatprep.subr.mxu0 0.0
      %1018 = vmatpush1.msra.mxu0 0.0
      %1019 = vmatprep.subr.mxu0 0.0
      %1020 = vmatpush1.msra.mxu0 0.0
      %1021 = vmatprep.subr.mxu0 0.0
      %1022 = vmatpush1.msra.mxu0 0.0
      %1023 = vmatprep.subr.mxu0 0.0
      %1024 = vmatpush1.msra.mxu0 0.0
      %1025 = vmatprep.subr.mxu0 0.0
      %1026 = vmatpush1.msra.mxu0 0.0
      %1027 = vmatprep.subr.mxu0 0.0
      %1028 = vmatpush1.msra.mxu0 0.0
      %1029 = vmatprep.subr.mxu0 0.0
      %1030 = vmatpush1.msra.mxu0 %v992
      %1031 = vmatprep.subr.mxu0 0.0
      %1032 = vmatpush1.msra.mxu0 %v991
      %1033 = vmatprep.subr.mxu0 0.0
      %1034 = vmatpush1.msra.mxu0 %v990
      %1035 = vmatprep.subr.mxu0 0.0
      %1036 = vmatpush1.msra.mxu0 %v989
      %1037 = vmatprep.subr.mxu0 0.0
      %1038 = vmatpush1.msra.mxu0 %v988
      %1039 = vmatprep.subr.mxu0 0.0
      %1040 = vmatpush1.msra.mxu0 %v987
      %1041 = vmatprep.subr.mxu0 0.0
      %1042 = vmatpush2.msra.mxu0 0.0
      %1043 = vmatprep.subr.mxu0 0.0
      %1044 = vmatpush2.msra.mxu0 0.0
      %1045 = vmatprep.subr.mxu0 0.0
      %1046 = vmatpush2.msra.mxu0 0.0
      %1047 = vmatprep.subr.mxu0 0.0
      %1048 = vmatpush2.msra.mxu0 0.0
      %1049 = vmatprep.subr.mxu0 0.0
      %1050 = vmatpush2.msra.mxu0 0.0
      %1051 = vmatprep.subr.mxu0 0.0
      %1052 = vmatpush2.msra.mxu0 0.0
      %1053 = vmatprep.subr.mxu0 0.0
      %1054 = vmatpush2.msra.mxu0 0.0
      %1055 = vmatprep.subr.mxu0 0.0
      %1056 = vmatpush2.msra.mxu0 0.0
      %1057 = vmatprep.subr.mxu0 0.0
      %1058 = vmatpush2.msra.mxu0 0.0
      %1059 = vmatprep.subr.mxu0 0.0
      %1060 = vmatpush2.msra.mxu0 0.0
      %1061 = vmatprep.subr.mxu0 0.0
      %1062 = vmatpush2.msra.mxu0 0.0
      %1063 = vmatprep.subr.mxu0 0.0
      %1064 = vmatpush2.msra.mxu0 0.0
      %1065 = vmatprep.subr.mxu0 0.0
      %1066 = vmatpush2.msra.mxu0 0.0
      %1067 = vmatprep.subr.mxu0 0.0
      %1068 = vmatpush2.msra.mxu0 0.0
      %1069 = vmatprep.subr.mxu0 0.0
      %1070 = vmatpush2.msra.mxu0 0.0
      %1071 = vmatprep.subr.mxu0 0.0
      %1072 = vmatpush2.msra.mxu0 0.0
      %1073 = vmatprep.mubr.f32.mxu0 0.0
      %1074 = vmatmul.mubr.f32.gmra.mxu0 %v1007
      %v1075 = vpop.f32.mrf.mxu0
      %v1076 = vadd.f32 0.0, %v1075
      %v1077 = vpop.f32.mrf.mxu0
      %1078 = vdwg.mxu0
      %vm1079 = vcmask 39936
      %1080 = vst.msk [vmem:[%s381] sm:$0xff] %vm1079, %v1076
      %p1081 = scmp.lt.s32.totalorder %s21, 1
      %s1082 = scalar_select %p1081, %s21, 1
      %s1083 = smul.addr %s1082, 8
      %s1084 = scalar_lea.vmem %s10, %s1083
      // Predicated region
      $region61: #{intp_linear_layer1_forward.1} parent=59 // pred_check
        %p1085 = pneg %p259
      $region62: #{intp_linear_layer1_forward.1} parent=59 // pred_check_branch
        %1087 = sbr.rel (%p1085) target = $region64
      $region63: #{intp_linear_layer1_forward.1} parent=59 // pred_region
        _
      $region64: #{intp_linear_layer1_forward.1} parent=59 // pred_fallthru
        _
    $region60: #{intp_linear_layer1_forward.1} parent=5 // pred_fallthru
      _
    %p1088 = scmp.le.s32.totalorder 2, %s16
    // Predicated region
    $region65: #{intp_linear_layer1_forward.1} parent=5 // pred_check
      %p1089 = pneg %p1088
    $region66: #{intp_linear_layer1_forward.1} parent=5 // pred_check_branch
      %1091 = sbr.rel (%p1089) target = $region68
    $region67: #{intp_linear_layer1_forward.1} parent=5 // pred_region
      %s1092 = ssub.s32 %s16, 2
      // Predicated region
      $region69: #{intp_linear_layer1_forward.1} parent=67 // pred_check
        %p1093 = pneg %p265
      $region70: #{intp_linear_layer1_forward.1} parent=67 // pred_check_branch
        %1095 = sbr.rel (%p1093) target = $region72
      $region71: #{intp_linear_layer1_forward.1} parent=67 // pred_region
        %p1096 = scmp.lt.s32.totalorder %s22, 1
        %s1097 = scalar_select %p1096, %s22, 1
        %s1098 = smul.addr %s1097, 8
        %s1099 = scalar_lea.vmem %s10, %s1098
      $region72: #{intp_linear_layer1_forward.1} parent=67 // pred_fallthru
        _
    $region68: #{intp_linear_layer1_forward.1} parent=5 // pred_fallthru
      _
  $region6: #{intp_linear_layer1_forward.1} parent=0 // loop_footer
    %s20 = sadd.s32 1, %s16
  $region7: #{intp_linear_layer1_forward.1} parent=0 // loop_footer_branch
    %15 = sbr.rel target = $region3
  $region8: #{intp_linear_layer1_forward.1} parent=0 // loop_exit
    _

</llo_original>
